<compile_context>
chip_gen: v5e
topology: v5e:2x2
jax: 0.10.0
libtpu: 0.0.40
codegen_flags: <defaults>
</compile_context>

<pallas_src>
import functools

import numpy as np
import jax
import jax.numpy as jnp
from jax.experimental import pallas as pl
from jax.experimental.pallas import tpu as pltpu

_VMEM_LIMIT_BYTES = 32 * 1024 * 1024   # scoped limit (required on v5e, safe on v6e/v7x)


def _vmem_budget_bytes():
    """Working-set budget for one grid step's pipeline buffers, per generation."""
    try:
        cap = int(getattr(pltpu.get_tpu_info(), "vmem_capacity_bytes",
                          128 * 1024 * 1024))
    except Exception:  # non-TPU trace / older runtime: be conservative
        cap = 64 * 1024 * 1024
    if cap <= 64 * 1024 * 1024:        # v7x: 64 MiB per TC -> leave headroom
        return 12 * 1024 * 1024
    return 24 * 1024 * 1024            # v5e/v6e: 128 MiB physical


def _bytes_per_row(C, x_bytes):
    # Inputs: traces f32 + s i8 + x (caller dtype) + summed f32; outputs: 2 x f32.
    # Everything double-buffered by the automatic pipeline (conservative for the
    # fused kernel where state is resident rather than streamed).
    return 2 * C * (4 + 1 + x_bytes + 4 + 4 + 4)


def _choose_block_rows(R, C, x_bytes, want_steps=4):
    """Row-block size: full array for small populations, else a multiple of 32
    that (a) fits the VMEM budget and (b) yields >= `want_steps` grid steps."""
    if R <= 256:
        return R  # single block; full-array dims are always legal block dims
    cap = max(32, (_vmem_budget_bytes() // _bytes_per_row(C, x_bytes)) // 32 * 32)
    per_step = max(32, (R // want_steps) // 32 * 32)
    return min(cap, per_step)


# ---------------------------------------------------------------------------
# Single simulation step (the module's forward()).
# ---------------------------------------------------------------------------

def _step_kernel(traces_ref, s_ref, x_ref, summed_ref,
                 new_traces_ref, new_summed_ref, *, trace_decay, trace_scale):
    # self.traces *= trace_decay ; self.traces += trace_scale * self.s.float()
    s_f = s_ref[...].astype(jnp.float32)
    new_traces_ref[...] = traces_ref[...] * trace_decay + trace_scale * s_f
    # self.summed += x.float()
    new_summed_ref[...] = summed_ref[...] + x_ref[...].astype(jnp.float32)


def neural_population_forward(traces, s, x, summed, trace_decay, trace_scale):
    """One step of NeuralPopulation.forward (additive spike trace + sum_input).

    traces/summed: persistent f32 state buffers (cast here if not already f32).
    s: int8/bool spike tensor; x: any float dtype (bf16 saves HBM traffic) —
    both are cast to f32 inside the kernel, never in the wrapper.
    Returns (new_traces, new_summed).
    """
    R, C = traces.shape
    traces = traces.astype(jnp.float32)
    summed = summed.astype(jnp.float32)
    x_bytes = jnp.dtype(x.dtype).itemsize

    block_rows = _choose_block_rows(R, C, x_bytes)
    grid = (pl.cdiv(R, block_rows),)
    vspec = pl.BlockSpec((block_rows, C), lambda i: (i, 0))

    kernel = functools.partial(_step_kernel,
                               trace_decay=float(trace_decay),
                               trace_scale=float(trace_scale))

    fn = pl.pallas_call(
        kernel,
        out_shape=(jax.ShapeDtypeStruct((R, C), jnp.float32),
                   jax.ShapeDtypeStruct((R, C), jnp.float32)),
        grid_spec=pl.GridSpec(
            grid=grid,
            in_specs=[vspec, vspec, vspec, vspec],
            out_specs=(vspec, vspec),
        ),
        # traces -> new_traces, summed -> new_summed (in-place when donated).
        input_output_aliases={0: 0, 3: 1},
        compiler_params=pltpu.CompilerParams(
            dimension_semantics=("parallel",),
            vmem_limit_bytes=_VMEM_LIMIT_BYTES,
        ),
    )
    return fn(traces, s, x, summed)


# ---------------------------------------------------------------------------
# T fused simulation steps in one pallas_call (state resident in VMEM).
# ---------------------------------------------------------------------------

def _fused_kernel(traces_ref, summed_ref, s_ref, x_ref,
                  new_traces_ref, new_summed_ref,
                  traces_acc, summed_acc, *, trace_decay, trace_scale):
    t = pl.program_id(1)

    @pl.when(t == 0)
    def _():
        traces_acc[...] = traces_ref[...]
        summed_acc[...] = summed_ref[...]

    s_f = s_ref[0].astype(jnp.float32)
    traces_acc[...] = traces_acc[...] * trace_decay + trace_scale * s_f
    summed_acc[...] = summed_acc[...] + x_ref[0].astype(jnp.float32)

    @pl.when(t == pl.num_programs(1) - 1)
    def _():
        new_traces_ref[...] = traces_acc[...]
        new_summed_ref[...] = summed_acc[...]


def neural_population_forward_steps(traces, s_seq, x_seq, summed,
                                    trace_decay, trace_scale):
    """T fused forward steps. s_seq/x_seq have shape (T, R, C); only they stream
    from HBM per step — traces/summed stay in VMEM scratch across the time axis.
    Returns (new_traces, new_summed) after T steps.
    """
    T, R, C = s_seq.shape
    traces = traces.astype(jnp.float32)
    summed = summed.astype(jnp.float32)
    x_bytes = jnp.dtype(x_seq.dtype).itemsize

    block_rows = _choose_block_rows(R, C, x_bytes)
    grid = (pl.cdiv(R, block_rows), T)

    state_spec = pl.BlockSpec((block_rows, C), lambda i, t: (i, 0))
    seq_spec = pl.BlockSpec((1, block_rows, C), lambda i, t: (t, i, 0))

    kernel = functools.partial(_fused_kernel,
                               trace_decay=float(trace_decay),
                               trace_scale=float(trace_scale))

    fn = pl.pallas_call(
        kernel,
        out_shape=(jax.ShapeDtypeStruct((R, C), jnp.float32),
                   jax.ShapeDtypeStruct((R, C), jnp.float32)),
        grid_spec=pl.GridSpec(
            grid=grid,
            in_specs=[state_spec, state_spec, seq_spec, seq_spec],
            out_specs=(state_spec, state_spec),
            scratch_shapes=[pltpu.VMEM((block_rows, C), jnp.float32),
                            pltpu.VMEM((block_rows, C), jnp.float32)],
        ),
        # traces -> new_traces, summed -> new_summed (in-place when donated).
        input_output_aliases={0: 0, 1: 1},
        compiler_params=pltpu.CompilerParams(
            dimension_semantics=("parallel", "arbitrary"),
            vmem_limit_bytes=_VMEM_LIMIT_BYTES,
        ),
    )
    return fn(traces, summed, s_seq, x_seq)


if __name__ == "__main__":
    key = jax.random.PRNGKey(0)
    k1, k2, k3, k4, k5 = jax.random.split(key, 5)

    # Population of n = 16*128 = 2048 neurons -> state buffers of this shape.
    shape = (16, 128)
    T = 8  # fused simulation steps

    # Deterministic state / input initialization.
    traces = jax.random.uniform(k1, shape, dtype=jnp.float32)        # spike traces
    s = (jax.random.uniform(k2, shape) > 0.7).astype(jnp.int8)       # spike tensor
    x = jax.random.normal(k3, shape, dtype=jnp.float32)              # input spike trace
    summed = jnp.zeros(shape, dtype=jnp.float32)                     # accumulated input

    s_seq = (jax.random.uniform(k4, (T,) + shape) > 0.7).astype(jnp.int8)
    x_seq = jax.random.normal(k5, (T,) + shape, dtype=jnp.bfloat16)  # bf16 stream

    # Module hyper-parameters (defaults) + compute_decay():
    dt, tau_s, trace_scale = 0.1, 15.0, 1.0
    trace_decay = float(np.exp(-dt / tau_s))

    # --- single step ---
    ref_traces = traces * trace_decay + trace_scale * s.astype(jnp.float32)
    ref_summed = summed + x
    new_traces, new_summed = neural_population_forward(
        traces, s, x, summed, trace_decay, trace_scale)
    jax.block_until_ready((new_traces, new_summed))
    np.testing.assert_allclose(np.asarray(new_traces), np.asarray(ref_traces),
                               rtol=1e-6, atol=1e-6)
    np.testing.assert_allclose(np.asarray(new_summed), np.asarray(ref_summed),
                               rtol=1e-6, atol=1e-6)

    # --- T fused steps ---
    ref_tr, ref_sm = traces, summed
    for t in range(T):
        ref_tr = ref_tr * trace_decay + trace_scale * s_seq[t].astype(jnp.float32)
        ref_sm = ref_sm + x_seq[t].astype(jnp.float32)
    fused_tr, fused_sm = neural_population_forward_steps(
        traces, s_seq, x_seq, summed, trace_decay, trace_scale)
    jax.block_until_ready((fused_tr, fused_sm))
    np.testing.assert_allclose(np.asarray(fused_tr), np.asarray(ref_tr),
                               rtol=1e-5, atol=1e-5)
    np.testing.assert_allclose(np.asarray(fused_sm), np.asarray(ref_sm),
                               rtol=1e-5, atol=1e-5)

    print("KERNEL_OK")
</pallas_src>

<mosaic_0001>
module attributes {stable_mosaic.version = 11 : i64} {
  func.func @_step_kernel(%arg0: i32, %arg1: memref<16x128xf32, #tpu.memory_space<vmem>>, %arg2: memref<16x128xi8, #tpu.memory_space<vmem>>, %arg3: memref<16x128xf32, #tpu.memory_space<vmem>>, %arg4: memref<16x128xf32, #tpu.memory_space<vmem>>, %arg5: memref<16x128xf32, #tpu.memory_space<vmem>>, %arg6: memref<16x128xf32, #tpu.memory_space<vmem>>) attributes {dimension_semantics = [#tpu.dimension_semantics<parallel>], iteration_bounds = array<i64: 1>, scalar_prefetch = 0 : i64, scratch_operands = 0 : i64, tpu.core_type = #tpu.core_type<tc>, window_params = [{transform_indices = @transform_0, window_bounds = array<i64: 16, 128>}, {transform_indices = @transform_1, window_bounds = array<i64: 16, 128>}, {transform_indices = @transform_2, window_bounds = array<i64: 16, 128>}, {transform_indices = @transform_3, window_bounds = array<i64: 16, 128>}, {transform_indices = @transform_4, window_bounds = array<i64: 16, 128>}, {transform_indices = @transform_5, window_bounds = array<i64: 16, 128>}]} {
    %c0 = arith.constant 0 : index
    %c0_0 = arith.constant 0 : index
    %0 = vector.load %arg2[%c0, %c0_0] : memref<16x128xi8, #tpu.memory_space<vmem>>, vector<16x128xi8>
    %1 = arith.sitofp %0 : vector<16x128xi8> to vector<16x128xf32>
    %c0_1 = arith.constant 0 : index
    %c0_2 = arith.constant 0 : index
    %2 = vector.load %arg1[%c0_1, %c0_2] : memref<16x128xf32, #tpu.memory_space<vmem>>, vector<16x128xf32>
    %cst = arith.constant 0.993355512 : f32
    %3 = vector.broadcast %cst : f32 to vector<16x128xf32>
    %4 = arith.mulf %2, %3 : vector<16x128xf32>
    %cst_3 = arith.constant 1.000000e+00 : f32
    %5 = vector.broadcast %cst_3 : f32 to vector<16x128xf32>
    %6 = arith.mulf %5, %1 : vector<16x128xf32>
    %7 = arith.addf %4, %6 : vector<16x128xf32>
    %c0_4 = arith.constant 0 : index
    %c0_5 = arith.constant 0 : index
    %8 = vector.load %arg5[%c0_4, %c0_5] : memref<16x128xf32, #tpu.memory_space<vmem>>, vector<16x128xf32>
    tpu.vector_store %arg5[%c0_4, %c0_5], %7 {strides = array<i32>} : memref<16x128xf32, #tpu.memory_space<vmem>>, vector<16x128xf32>,
    %c0_6 = arith.constant 0 : index
    %c0_7 = arith.constant 0 : index
    %9 = vector.load %arg4[%c0_6, %c0_7] : memref<16x128xf32, #tpu.memory_space<vmem>>, vector<16x128xf32>
    %c0_8 = arith.constant 0 : index
    %c0_9 = arith.constant 0 : index
    %10 = vector.load %arg3[%c0_8, %c0_9] : memref<16x128xf32, #tpu.memory_space<vmem>>, vector<16x128xf32>
    %11 = arith.addf %9, %10 : vector<16x128xf32>
    %c0_10 = arith.constant 0 : index
    %c0_11 = arith.constant 0 : index
    %12 = vector.load %arg6[%c0_10, %c0_11] : memref<16x128xf32, #tpu.memory_space<vmem>>, vector<16x128xf32>
    tpu.vector_store %arg6[%c0_10, %c0_11], %11 {strides = array<i32>} : memref<16x128xf32, #tpu.memory_space<vmem>>, vector<16x128xf32>,
    return
  }
  func.func @transform_0(%arg0: i32) -> (i32, i32) {
    %c0_i32 = arith.constant 0 : i32
    %c0_i32_0 = arith.constant 0 : i32
    return %arg0, %c0_i32 : i32, i32
  }
  func.func @transform_1(%arg0: i32) -> (i32, i32) {
    %c0_i32 = arith.constant 0 : i32
    %c0_i32_0 = arith.constant 0 : i32
    return %arg0, %c0_i32 : i32, i32
  }
  func.func @transform_2(%arg0: i32) -> (i32, i32) {
    %c0_i32 = arith.constant 0 : i32
    %c0_i32_0 = arith.constant 0 : i32
    return %arg0, %c0_i32 : i32, i32
  }
  func.func @transform_3(%arg0: i32) -> (i32, i32) {
    %c0_i32 = arith.constant 0 : i32
    %c0_i32_0 = arith.constant 0 : i32
    return %arg0, %c0_i32 : i32, i32
  }
  func.func @transform_4(%arg0: i32) -> (i32, i32) {
    %c0_i32 = arith.constant 0 : i32
    %c0_i32_0 = arith.constant 0 : i32
    return %arg0, %c0_i32 : i32, i32
  }
  func.func @transform_5(%arg0: i32) -> (i32, i32) {
    %c0_i32 = arith.constant 0 : i32
    %c0_i32_0 = arith.constant 0 : i32
    return %arg0, %c0_i32 : i32, i32
  }
}

</mosaic_0001>

<llo_original>
// kernel: tpu_custom_call.1
$region0: #{tpu_custom_call.1}
  #allocation0 [shape = 'u32[]', space=smem, size = 0x4, offset = 0x4, fixed_abs, tag = 'smem constant byte address 0x4 - core index']
  #allocation1 [shape = 'u32[72,128]{1,0:T(1,128)}', space=vmem, size = 0x9000, scoped, tag = 'internal scratch']
  %s0 = inlined_call_operand.hbm [shape: f32[16,128], index: 0, kind: input, shape index: {}, may-alias: {0,4}]
  %s1 = inlined_call_operand.vmem [shape: s8[16,128], index: 1, kind: input, shape index: {}]
  %s2 = inlined_call_operand.vmem [shape: f32[16,128], index: 2, kind: input, shape index: {}]
  %s3 = inlined_call_operand.hbm [shape: f32[16,128], index: 3, kind: input, shape index: {}, may-alias: {3,5}]
  %s4 = inlined_call_operand.hbm [shape: f32[16,128], index: 4, kind: output, shape index: {0}, may-alias: {0,4}]
  %s5 = inlined_call_operand.hbm [shape: f32[16,128], index: 5, kind: output, shape index: {1}, may-alias: {3,5}]
  %6 = xla_tuple %s4, %s5
  %s7 = sld [smem:[#allocation0]]
  $region42: #{tpu_custom_call.1} parent=0
    _
  %s9 = ssub.s32 1, %s7
  %s10 = scalar_select 0, %s9, %s7
  $region1: #{tpu_custom_call.1} parent=0
    #allocation2 [shape = 'u8[8192]{0}', space=vmem, size = 0x2000, scoped, tag = 'input window, operand 0, single buffered']
    #allocation3 [shape = 's32[1]{0}', space=sflag, size = 0x4, scoped, tag = 'scoped memory for tpu_custom_call.1']
    #allocation4 [shape = 's32[1]{0}', space=sflag, size = 0x4, scoped, tag = 'scoped memory for tpu_custom_call.1']
    #allocation5 [shape = 'u8[8192]{0}', space=vmem, size = 0x2000, scoped, tag = 'input window, operand 3, single buffered']
    #allocation6 [shape = 's32[1]{0}', space=sflag, size = 0x4, scoped, tag = 'scoped memory for tpu_custom_call.1']
    #allocation7 [shape = 'u8[8192]{0}', space=vmem, size = 0x2000, scoped, tag = 'output window, operand 0, single buffered']
    #allocation8 [shape = 'u8[8192]{0}', space=vmem, size = 0x2000, scoped, tag = 'output window, operand 1, single buffered']
    #allocation9 [shape = 's32[1]{0}', space=sflag, size = 0x4, scoped, tag = 'scoped memory for tpu_custom_call.1']
    %11 = vsyncpa [#allocation3], 0
    %12 = vsyncpa [#allocation6], 0
    %13 = vsyncpa [#allocation4], 0
    %14 = vsyncpa [#allocation9], 0
    // Predicated region
    $region2: #{tpu_custom_call.1} parent=1 // pred_check
      _
    $region3: #{tpu_custom_call.1} parent=1 // pred_check_branch
      %16 = sbr.rel (0) target = $region5
    $region4: #{tpu_custom_call.1} parent=1 // pred_region
      %18 = vsyncadd [#allocation3], 0
      %s19 = sshll.u32 %s0, 4
      %s20 = int_to_ptr.hbm [resolvable:$true] %s19
      %s21 = sshll.u32 [#allocation2], 4
      %s22 = int_to_ptr.vmem [resolvable:$true] %s21
      %27 = dma.hbm_to_vmem [thread:$0]  %s20, 256, %s22, [#allocation3], 128, 128, 8
    $region5: #{tpu_custom_call.1} parent=1 // pred_fallthru
      _
    // Predicated region
    $region6: #{tpu_custom_call.1} parent=1 // pred_check
      _
    $region7: #{tpu_custom_call.1} parent=1 // pred_check_branch
      %29 = sbr.rel (0) target = $region9
    $region8: #{tpu_custom_call.1} parent=1 // pred_region
      _
    $region9: #{tpu_custom_call.1} parent=1 // pred_fallthru
      _
    // Predicated region
    $region10: #{tpu_custom_call.1} parent=1 // pred_check
      _
    $region11: #{tpu_custom_call.1} parent=1 // pred_check_branch
      %31 = sbr.rel (0) target = $region13
    $region12: #{tpu_custom_call.1} parent=1 // pred_region
      _
    $region13: #{tpu_custom_call.1} parent=1 // pred_fallthru
      _
    // Predicated region
    $region14: #{tpu_custom_call.1} parent=1 // pred_check
      _
    $region15: #{tpu_custom_call.1} parent=1 // pred_check_branch
      %33 = sbr.rel (0) target = $region17
    $region16: #{tpu_custom_call.1} parent=1 // pred_region
      %35 = vsyncadd [#allocation6], 0
      %s36 = sshll.u32 %s3, 4
      %s37 = int_to_ptr.hbm [resolvable:$true] %s36
      %s38 = sshll.u32 [#allocation5], 4
      %s39 = int_to_ptr.vmem [resolvable:$true] %s38
      %44 = dma.hbm_to_vmem [thread:$0]  %s37, 256, %s39, [#allocation6], 128, 128, 8
    $region17: #{tpu_custom_call.1} parent=1 // pred_fallthru
      _
    // Predicated region
    $region18: #{tpu_custom_call.1} parent=1 // pred_check
      _
    $region19: #{tpu_custom_call.1} parent=1 // pred_check_branch
      %46 = sbr.rel (0) target = $region21
    $region20: #{tpu_custom_call.1} parent=1 // pred_region
      %48 = dma.done [#allocation3], 256
    $region21: #{tpu_custom_call.1} parent=1 // pred_fallthru
      _
    // Predicated region
    $region22: #{tpu_custom_call.1} parent=1 // pred_check
      _
    $region23: #{tpu_custom_call.1} parent=1 // pred_check_branch
      %50 = sbr.rel (0) target = $region25
    $region24: #{tpu_custom_call.1} parent=1 // pred_region
      %52 = dma.done [#allocation6], 256
    $region25: #{tpu_custom_call.1} parent=1 // pred_fallthru
      _
    %v53 = vld [vmem:[%s1] sm:$0x3]
    %v54 = vld [vmem:[%s1 + $0x2] sm:$0x3]
    %v55 = vunpack.c.0.s8 %v53
    %v56 = vunpack.c.0.s8 %v54
    %v57 = vcvt.s32.f32 %v55
    %v58 = vcvt.s32.f32 %v56
    %v59 = vld [vmem:[#allocation2] sm:$0xff]
    %v60 = vld [vmem:[#allocation2 + $0x8] sm:$0xff]
    %v61 = vmul.f32 %v59, 0.9933555
    %v62 = vmul.f32 %v60, 0.9933555
    %v63 = vadd.f32 %v61, %v57
    %v64 = vadd.f32 %v62, %v58
    %65 = vst [vmem:[#allocation7] sm:$0xff] %v63
    %66 = vst [vmem:[#allocation7 + $0x8] sm:$0xff] %v64
    %v67 = vld [vmem:[#allocation5] sm:$0xff]
    %v68 = vld [vmem:[#allocation5 + $0x8] sm:$0xff]
    %v69 = vld [vmem:[%s2] sm:$0xff]
    %v70 = vld [vmem:[%s2 + $0x8] sm:$0xff]
    %v71 = vadd.f32 %v67, %v69
    %v72 = vadd.f32 %v68, %v70
    %73 = vst [vmem:[#allocation8] sm:$0xff] %v71
    %74 = vst [vmem:[#allocation8 + $0x8] sm:$0xff] %v72
    // Predicated region
    $region26: #{tpu_custom_call.1} parent=1 // pred_check
      _
    $region27: #{tpu_custom_call.1} parent=1 // pred_check_branch
      %76 = sbr.rel (0) target = $region29
    $region28: #{tpu_custom_call.1} parent=1 // pred_region
      %78 = vsyncadd [#allocation4], 0
      %s79 = sshll.u32 [#allocation7], 4
      %s80 = int_to_ptr.vmem [resolvable:$true] %s79
      %s81 = sshll.u32 %s4, 4
      %s82 = int_to_ptr.hbm [resolvable:$true] %s81
      %87 = dma.vmem_to_hbm [thread:$0]  %s80, 256, %s82, [#allocation4], 128, 128, 8
    $region29: #{tpu_custom_call.1} parent=1 // pred_fallthru
      _
    // Predicated region
    $region30: #{tpu_custom_call.1} parent=1 // pred_check
      _
    $region31: #{tpu_custom_call.1} parent=1 // pred_check_branch
      %89 = sbr.rel (0) target = $region33
    $region32: #{tpu_custom_call.1} parent=1 // pred_region
      %91 = vsyncadd [#allocation9], 0
      %s92 = sshll.u32 [#allocation8], 4
      %s93 = int_to_ptr.vmem [resolvable:$true] %s92
      %s94 = sshll.u32 %s5, 4
      %s95 = int_to_ptr.hbm [resolvable:$true] %s94
      %100 = dma.vmem_to_hbm [thread:$0]  %s93, 256, %s95, [#allocation9], 128, 128, 8
    $region33: #{tpu_custom_call.1} parent=1 // pred_fallthru
      _
    // Predicated region
    $region34: #{tpu_custom_call.1} parent=1 // pred_check
      _
    $region35: #{tpu_custom_call.1} parent=1 // pred_check_branch
      %102 = sbr.rel (0) target = $region37
    $region36: #{tpu_custom_call.1} parent=1 // pred_region
      %104 = dma.done [#allocation4], 256
    $region37: #{tpu_custom_call.1} parent=1 // pred_fallthru
      _
    // Predicated region
    $region38: #{tpu_custom_call.1} parent=1 // pred_check
      _
    $region39: #{tpu_custom_call.1} parent=1 // pred_check_branch
      %106 = sbr.rel (0) target = $region41
    $region40: #{tpu_custom_call.1} parent=1 // pred_region
      %108 = dma.done [#allocation9], 256
    $region41: #{tpu_custom_call.1} parent=1 // pred_fallthru
      _
    %109 = vsyncpa [#allocation3], 1
    %110 = vsyncpa [#allocation6], 1
    %111 = vsyncpa [#allocation4], 1
    %112 = vsyncpa [#allocation9], 1

</llo_original>
